<compile_context>
chip_gen: v6e
topology: v6e:2x2x1
jax: 0.10.0
libtpu: 0.0.40
codegen_flags: <defaults>
</compile_context>

<pallas_src>
import functools

import numpy as np

import jax
import jax.numpy as jnp
from jax.experimental import pallas as pl
from jax.experimental.pallas import tpu as pltpu


def _lif_chunk_kernel(q_ref, rt_ref, ptot_ref, spike_ref, v_carry, ref_carry, *,
                      chunk, c8, ref_steps, v_reset, v_rest, a_chunk, max_iters):
    """Per-chunk probabilistic-LIF segment scan (one loop iteration per spike).

    q_ref     : VMEM (1, 8, c8) f32  -- Q_k (rebased potential-vs-threshold margin)
    rt_ref    : VMEM (1, 8, c8) f32  -- Rt[s] = P_exc[s] - V_reset * alpha^{-s}
    ptot_ref  : VMEM (1, 1, 1)  f32  -- P_{chunk-1} (for the end-of-chunk V carry)
    spike_ref : VMEM (1, 8, c8) f32  -- output spikes (0/1), lane-dense
    v_carry   : VMEM (1, 1, 1)  f32  -- membrane potential carried across chunks
    ref_carry : VMEM (1, 1, 1)  i32  -- refractory steps remaining at chunk start
    """

    @pl.when(pl.program_id(0) == 0)
    def _init():
        v_carry[...] = jnp.full((1, 1, 1), v_rest, jnp.float32)
        ref_carry[...] = jnp.zeros((1, 1, 1), jnp.int32)

    # Zero the output block once (a handful of vector stores); fire positions are
    # OR-ed in below.  (Supersedes the reviewed "aliased pre-zeroed output" idea.)
    spike_ref[...] = jnp.zeros_like(spike_ref)

    q = q_ref[...]                                            # (1, 8, c8)
    rt = rt_ref[...]                                          # (1, 8, c8)
    row = jax.lax.broadcasted_iota(jnp.int32, (1, 8, c8), 1)
    col = jax.lax.broadcasted_iota(jnp.int32, (1, 8, c8), 2)
    idx = row * c8 + col                                      # flat index within chunk
    big = jnp.int32(chunk)

    def _gather(vec, pos):
        # one-hot gather vec[pos] as a (1,1,1) array (0.0 if pos outside [0, chunk))
        sel = jnp.where(idx == pos, vec, 0.0)
        return jnp.sum(jnp.sum(sel, axis=2, keepdims=True), axis=1, keepdims=True)

    s0 = ref_carry[...]                                       # (1,1,1) i32
    v0 = v_carry[...]                                         # (1,1,1) f32
    # R(s, v) = P_exc[s] - v*alpha^{-s}.  When s0 > 0 the previous event was a fire,
    # so v0 == V_reset and R(s0, v0) == Rt[s0]; when s0 == 0, R = -v0 (P_exc[0] = 0).
    r0 = jnp.where(s0 == 0, -v0, _gather(rt, s0))
    flag0 = jnp.zeros_like(s0)    # 0: never integrated, 1: ended by fire, 2: ended quiet

    def _body(_, carry):
        s, r, flag = carry
        active = s < big
        # first element >= s whose rebased potential exceeds its rebased threshold
        cand = jnp.where((q > r) & (idx >= s), idx, big)
        k = jnp.min(jnp.min(cand, axis=2, keepdims=True), axis=1, keepdims=True)
        fired = k < big
        # record the spike (no-op when k == chunk: idx never equals chunk)
        spike_ref[...] = spike_ref[...] + (idx == k).astype(spike_ref.dtype)
        # next integration step is after the refractory window, entering with V_reset
        s_next = k + jnp.int32(1 + ref_steps)
        r_next = _gather(rt, s_next)                          # unused if s_next >= chunk
        s_new = jnp.where(fired, s_next, jnp.where(active, big, s))
        r_new = jnp.where(fired, r_next, r)
        flag_new = jnp.where(fired, jnp.int32(1),
                             jnp.where(active, jnp.int32(2), flag))
        return s_new, r_new, flag_new

    carry = (s0, r0, flag0)
    if max_iters <= 8:
        # short, fixed trip count at the module defaults -> unroll
        for _ in range(max_iters):
            carry = _body(0, carry)
    else:
        carry = jax.lax.fori_loop(0, max_iters, _body, carry)
    s_end, r_end, flag = carry

    # (V, refractory) carried into the next chunk.
    v_quiet = jnp.float32(a_chunk) * (ptot_ref[...] - r_end)  # V at the last element
    v_carry[...] = jnp.where(flag == 2, v_quiet,
                             jnp.where(flag == 1,
                                       jnp.full_like(v_quiet, v_reset), v0))
    ref_carry[...] = jnp.maximum(s_end - big, 0)


def probabilistic_lif_forward(x, key=None, *, dt=1e-3, C=1.0, g_L=0.1, E_L=-70.0,
                              V_reset=-80.0, V_rest=-70.0, beta=0.1, V_offset=0.0,
                              tau_ref=2.0, chunk=8192, u=None):
    """JAX/Pallas equivalent of ProbabilisticLIFActivation.forward(x)."""
    if beta <= 0.0:
        # the monotone threshold rewrite assumes beta > 0 (module default 0.1)
        raise ValueError("probabilistic_lif_forward requires beta > 0")
    lam = g_L * dt / C
    alpha = 1.0 - lam
    if alpha <= 0.0:
        raise ValueError("probabilistic_lif_forward requires g_L*dt/C < 1")
    ref_steps = int(tau_ref / dt)               # same host-side expression as the module

    orig_shape = x.shape
    x_flat = jnp.asarray(x, jnp.float32).reshape(-1)
    n = x_flat.shape[0]
    if u is None:
        if key is None:
            raise ValueError("pass a PRNG key or explicit uniform draws `u`")
        u = jax.random.uniform(key, (n,), dtype=jnp.float32)
    else:
        u = jnp.asarray(u, jnp.float32).reshape(-1)

    # ---- chunk sizing (review: 8-16K default; tiles are tiny in VMEM anyway) ----
    if chunk <= 0 or chunk % 1024 != 0:
        raise ValueError("chunk must be a positive multiple of 1024")
    chunk = min(chunk, max(1024, -(-n // 1024) * 1024))       # no oversized padding
    if lam > 0.0 and chunk * lam > 4.0:                        # keep alpha^{-chunk} tame
        chunk = max(1024, int((4.0 / lam) // 1024) * 1024)
    c8 = chunk // 8

    # ---- vectorised element-independent precompute (fused by XLA, HBM roofline) ----
    b = (g_L * E_L + x_flat) * (dt / C)
    # atanh(2u-1) == 0.5*log(u/(1-u))  (one log instead of generic arctanh)
    thr = 0.5 * jnp.log(u / (1.0 - u)) / beta - V_offset
    # fold clamp(V,-100,100) exactly into the threshold (clamp only affects the
    # firing probability; the stored V stays unclamped, as in the reference)
    thr = jnp.where(thr >= 100.0, jnp.float32(jnp.inf), thr)
    thr = jnp.where(thr < -100.0, jnp.float32(-jnp.inf), thr)

    n_chunks = -(-n // chunk)
    n_pad = n_chunks * chunk
    if n_pad != n:
        b = jnp.pad(b, (0, n_pad - n))
        thr = jnp.pad(thr, (0, n_pad - n), constant_values=jnp.inf)   # tail never fires

    b2 = b.reshape(n_chunks, chunk)
    thr2 = thr.reshape(n_chunks, chunk)

    # per-chunk rebasing powers, exact in float64 on the host (chunk/alpha are static)
    j = np.arange(chunk, dtype=np.float64)
    pw = jnp.asarray(np.power(1.0 / alpha, j + 1.0), dtype=jnp.float32)  # alpha^{-(j+1)}
    ap = jnp.asarray(np.power(1.0 / alpha, j), dtype=jnp.float32)        # alpha^{-j}
    a_chunk = float(alpha ** chunk)

    c = b2 * pw[None, :]
    p_inc = jnp.cumsum(c, axis=1)                                        # P_k (inclusive)
    p_exc = jnp.concatenate(
        [jnp.zeros((n_chunks, 1), jnp.float32), p_inc[:, :-1]], axis=1)  # P_exc[s]
    q = p_inc - thr2 * pw[None, :]                       # Q_k = P_k - thr_k*alpha^{-(k+1)}
    rt = p_exc - jnp.float32(V_reset) * ap[None, :]      # Rt[s] = P_exc[s] - V_reset*alpha^{-s}
    ptot = p_inc[:, -1].reshape(n_chunks, 1, 1)

    q3 = q.reshape(n_chunks, 8, c8)
    rt3 = rt.reshape(n_chunks, 8, c8)

    # at most one fire per (1 + ref_steps) elements, plus one final quiet scan
    max_fires = -(-chunk // (1 + ref_steps))
    max_iters = max_fires + 1

    kernel = functools.partial(
        _lif_chunk_kernel, chunk=chunk, c8=c8, ref_steps=ref_steps,
        v_reset=float(V_reset), v_rest=float(V_rest), a_chunk=a_chunk,
        max_iters=max_iters)

    out3 = pl.pallas_call(
        kernel,
        out_shape=jax.ShapeDtypeStruct((n_chunks, 8, c8), jnp.float32),
        grid=(n_chunks,),
        in_specs=[
            pl.BlockSpec((1, 8, c8), lambda i: (i, 0, 0)),   # Q
            pl.BlockSpec((1, 8, c8), lambda i: (i, 0, 0)),   # Rt
            pl.BlockSpec((1, 1, 1), lambda i: (i, 0, 0)),    # P_{chunk-1}
        ],
        out_specs=pl.BlockSpec((1, 8, c8), lambda i: (i, 0, 0)),
        scratch_shapes=[pltpu.VMEM((1, 1, 1), jnp.float32),  # V carry
                        pltpu.VMEM((1, 1, 1), jnp.int32)],   # refractory carry
        compiler_params=pltpu.CompilerParams(
            dimension_semantics=("arbitrary",)),             # serial carry across chunks
    )(q3, rt3, ptot)

    return out3.reshape(n_pad)[:n].reshape(orig_shape)


def _lif_reference(x_flat, u, *, dt, C, g_L, E_L, V_reset, V_rest, beta, V_offset,
                   tau_ref):
    """Pure-JAX serial port of the PyTorch forward (same uniform draws)."""
    ref_steps = int(tau_ref / dt)

    def step(carry, inp):
        V, ref = carry
        xi, ui = inp

        def refractory(op):
            V, ref = op
            return (V, ref - 1), jnp.float32(0.0)

        def integrate(op):
            V, _ = op
            dV = (-g_L * (V - E_L) + xi) / C
            Vn = V + dV * dt
            Vcl = jnp.clip(Vn, -100.0, 100.0)
            prob = (jnp.tanh(beta * (Vcl + V_offset)) + 1.0) / 2.0
            fire = ui < prob
            V_out = jnp.where(fire, jnp.float32(V_reset), Vn)
            ref_out = jnp.where(fire, jnp.int32(ref_steps), jnp.int32(0))
            return (V_out, ref_out), jnp.where(fire, jnp.float32(1.0), jnp.float32(0.0))

        return jax.lax.cond(ref > 0, refractory, integrate, (V, ref))

    (_, _), spikes = jax.lax.scan(
        step, (jnp.float32(V_rest), jnp.int32(0)),
        (jnp.asarray(x_flat, jnp.float32), jnp.asarray(u, jnp.float32)))
    return spikes


if __name__ == "__main__":
    key = jax.random.PRNGKey(0)
    k_x, k_u = jax.random.split(key)

    shape = (2, 4, 16, 16)
    # upward-biased synaptic drive so the fire + refractory-skip paths are exercised
    x = jax.random.normal(k_x, shape, dtype=jnp.float32) * 50.0 + 300.0
    n = x.size
    u = jax.random.uniform(k_u, (n,), dtype=jnp.float32)

    out = probabilistic_lif_forward(x, u=u)
    out = jax.block_until_ready(out)
    assert out.shape == shape and out.dtype == jnp.float32
    assert bool(jnp.all((out == 0.0) | (out == 1.0)))

    # multi-chunk path: exercises the cross-chunk V carry and refractory spillover
    out_mc = probabilistic_lif_forward(x, u=u, chunk=1024)
    out_mc = jax.block_until_ready(out_mc)
    assert out_mc.shape == shape

    # pure-JAX serial reference with the same uniform draws (PyTorch semantics)
    ref = _lif_reference(x.reshape(-1), u, dt=1e-3, C=1.0, g_L=0.1, E_L=-70.0,
                         V_reset=-80.0, V_rest=-70.0, beta=0.1, V_offset=0.0,
                         tau_ref=2.0).reshape(shape)

    assert bool(jnp.array_equal(out, ref)), "single-chunk kernel != serial reference"
    assert bool(jnp.array_equal(out_mc, ref)), "multi-chunk kernel != serial reference"

    print("KERNEL_OK")
</pallas_src>

<mosaic_0001>
module attributes {stable_mosaic.version = 11 : i64} {
  func.func @_lif_chunk_kernel(%arg0: i32, %arg1: memref<1x8x256xf32, #tpu.memory_space<vmem>>, %arg2: memref<1x8x256xf32, #tpu.memory_space<vmem>>, %arg3: memref<1x1x1xf32, #tpu.memory_space<vmem>>, %arg4: memref<1x8x256xf32, #tpu.memory_space<vmem>>, %arg5: memref<1x1x1xf32, #tpu.memory_space<vmem>>, %arg6: memref<1x1x1xi32, #tpu.memory_space<vmem>>) attributes {dimension_semantics = [#tpu.dimension_semantics<arbitrary>], iteration_bounds = array<i64: 1>, scalar_prefetch = 0 : i64, scratch_operands = 2 : i64, tpu.core_type = #tpu.core_type<tc>, window_params = [{transform_indices = @transform_0, window_bounds = array<i64: 1, 8, 256>}, {transform_indices = @transform_1, window_bounds = array<i64: 1, 8, 256>}, {transform_indices = @transform_2, window_bounds = array<i64: 1, 1, 1>}, {transform_indices = @transform_3, window_bounds = array<i64: 1, 8, 256>}]} {
    %c0_i32 = arith.constant 0 : i32
    %0 = arith.cmpi eq, %arg0, %c0_i32 : i32
    %1 = arith.extui %0 : i1 to i32
    %c0_i32_0 = arith.constant 0 : i32
    %2 = arith.cmpi ne, %1, %c0_i32_0 : i32
    scf.if %2 {
      %cst_86 = arith.constant -7.000000e+01 : f32
      %165 = vector.broadcast %cst_86 : f32 to vector<1x1x1xf32>
      %c0_87 = arith.constant 0 : index
      %c0_88 = arith.constant 0 : index
      %c0_89 = arith.constant 0 : index
      %166 = vector.load %arg5[%c0_87, %c0_88, %c0_89] : memref<1x1x1xf32, #tpu.memory_space<vmem>>, vector<1x1x1xf32>
      tpu.vector_store %arg5[%c0_87, %c0_88, %c0_89], %165 {strides = array<i32>} : memref<1x1x1xf32, #tpu.memory_space<vmem>>, vector<1x1x1xf32>,
      %c0_i32_90 = arith.constant 0 : i32
      %167 = vector.broadcast %c0_i32_90 : i32 to vector<1x1x1xi32>
      %c0_91 = arith.constant 0 : index
      %c0_92 = arith.constant 0 : index
      %c0_93 = arith.constant 0 : index
      %168 = vector.load %arg6[%c0_91, %c0_92, %c0_93] : memref<1x1x1xi32, #tpu.memory_space<vmem>>, vector<1x1x1xi32>
      tpu.vector_store %arg6[%c0_91, %c0_92, %c0_93], %167 {strides = array<i32>} : memref<1x1x1xi32, #tpu.memory_space<vmem>>, vector<1x1x1xi32>,
    } else {
    }
    %cst = arith.constant 0.000000e+00 : f32
    %3 = vector.broadcast %cst : f32 to vector<1x8x256xf32>
    %c0 = arith.constant 0 : index
    %c0_1 = arith.constant 0 : index
    %c0_2 = arith.constant 0 : index
    %4 = vector.load %arg4[%c0, %c0_1, %c0_2] : memref<1x8x256xf32, #tpu.memory_space<vmem>>, vector<1x8x256xf32>
    tpu.vector_store %arg4[%c0, %c0_1, %c0_2], %3 {strides = array<i32>} : memref<1x8x256xf32, #tpu.memory_space<vmem>>, vector<1x8x256xf32>,
    %c0_3 = arith.constant 0 : index
    %c0_4 = arith.constant 0 : index
    %c0_5 = arith.constant 0 : index
    %5 = vector.load %arg1[%c0_3, %c0_4, %c0_5] : memref<1x8x256xf32, #tpu.memory_space<vmem>>, vector<1x8x256xf32>
    %c0_6 = arith.constant 0 : index
    %c0_7 = arith.constant 0 : index
    %c0_8 = arith.constant 0 : index
    %6 = vector.load %arg2[%c0_6, %c0_7, %c0_8] : memref<1x8x256xf32, #tpu.memory_space<vmem>>, vector<1x8x256xf32>
    %7 = tpu.iota {dimensions = array<i32: 1>} : vector<1x8x256xi32>
    %8 = tpu.iota {dimensions = array<i32: 2>} : vector<1x8x256xi32>
    %c256_i32 = arith.constant 256 : i32
    %9 = vector.broadcast %c256_i32 : i32 to vector<1x8x256xi32>
    %10 = arith.muli %7, %9 : vector<1x8x256xi32>
    %11 = arith.addi %10, %8 : vector<1x8x256xi32>
    %c0_9 = arith.constant 0 : index
    %c0_10 = arith.constant 0 : index
    %c0_11 = arith.constant 0 : index
    %12 = vector.load %arg6[%c0_9, %c0_10, %c0_11] : memref<1x1x1xi32, #tpu.memory_space<vmem>>, vector<1x1x1xi32>
    %c0_12 = arith.constant 0 : index
    %c0_13 = arith.constant 0 : index
    %c0_14 = arith.constant 0 : index
    %13 = vector.load %arg5[%c0_12, %c0_13, %c0_14] : memref<1x1x1xf32, #tpu.memory_space<vmem>>, vector<1x1x1xf32>
    %c0_i32_15 = arith.constant 0 : i32
    %14 = vector.broadcast %c0_i32_15 : i32 to vector<1x1x1xi32>
    %15 = arith.cmpi eq, %12, %14 : vector<1x1x1xi32>
    %cst_16 = arith.constant 0.000000e+00 : f32
    %16 = vector.broadcast %cst_16 : f32 to vector<1x1x1xf32>
    %17 = arith.subf %16, %13 : vector<1x1x1xf32>
    %18 = vector.broadcast %12 : vector<1x1x1xi32> to vector<1x8x256xi32>
    %19 = arith.cmpi eq, %11, %18 : vector<1x8x256xi32>
    %cst_17 = arith.constant 0.000000e+00 : f32
    %20 = vector.broadcast %cst_17 : f32 to vector<1x8x256xf32>
    %21 = arith.select %19, %6, %20 : vector<1x8x256xi1>, vector<1x8x256xf32>
    %cst_18 = arith.constant dense<0.000000e+00> : vector<1x8xf32>
    %22 = vector.multi_reduction <add>, %21, %cst_18 [2] : vector<1x8x256xf32> to vector<1x8xf32>
    %23 = vector.shape_cast %22 : vector<1x8xf32> to vector<1x8x1xf32>
    %cst_19 = arith.constant dense<0.000000e+00> : vector<1x1xf32>
    %24 = vector.multi_reduction <add>, %23, %cst_19 [1] : vector<1x8x1xf32> to vector<1x1xf32>
    %25 = vector.shape_cast %24 : vector<1x1xf32> to vector<1x1x1xf32>
    %26 = arith.select %15, %17, %25 : vector<1x1x1xi1>, vector<1x1x1xf32>
    %c0_i32_20 = arith.constant 0 : i32
    %27 = vector.broadcast %c0_i32_20 : i32 to vector<1x1x1xi32>
    %c2048_i32 = arith.constant 2048 : i32
    %28 = vector.broadcast %c2048_i32 : i32 to vector<1x1x1xi32>
    %29 = arith.cmpi slt, %12, %28 : vector<1x1x1xi32>
    %30 = vector.broadcast %26 : vector<1x1x1xf32> to vector<1x8x256xf32>
    %31 = arith.cmpf ogt, %5, %30 : vector<1x8x256xf32>
    %32 = vector.broadcast %12 : vector<1x1x1xi32> to vector<1x8x256xi32>
    %33 = arith.cmpi sge, %11, %32 : vector<1x8x256xi32>
    %34 = arith.andi %31, %33 : vector<1x8x256xi1>
    %c2048_i32_21 = arith.constant 2048 : i32
    %35 = vector.broadcast %c2048_i32_21 : i32 to vector<1x8x256xi32>
    %36 = arith.select %34, %11, %35 : vector<1x8x256xi1>, vector<1x8x256xi32>
    %cst_22 = arith.constant dense<2147483647> : vector<1x8xi32>
    %37 = vector.multi_reduction <minsi>, %36, %cst_22 [2] : vector<1x8x256xi32> to vector<1x8xi32>
    %38 = vector.shape_cast %37 : vector<1x8xi32> to vector<1x8x1xi32>
    %cst_23 = arith.constant dense<2147483647> : vector<1x1xi32>
    %39 = vector.multi_reduction <minsi>, %38, %cst_23 [1] : vector<1x8x1xi32> to vector<1x1xi32>
    %40 = vector.shape_cast %39 : vector<1x1xi32> to vector<1x1x1xi32>
    %c2048_i32_24 = arith.constant 2048 : i32
    %41 = vector.broadcast %c2048_i32_24 : i32 to vector<1x1x1xi32>
    %42 = arith.cmpi slt, %40, %41 : vector<1x1x1xi32>
    %c0_25 = arith.constant 0 : index
    %c0_26 = arith.constant 0 : index
    %c0_27 = arith.constant 0 : index
    %43 = vector.load %arg4[%c0_25, %c0_26, %c0_27] : memref<1x8x256xf32, #tpu.memory_space<vmem>>, vector<1x8x256xf32>
    %44 = vector.broadcast %40 : vector<1x1x1xi32> to vector<1x8x256xi32>
    %45 = arith.cmpi eq, %11, %44 : vector<1x8x256xi32>
    %46 = arith.extui %45 : vector<1x8x256xi1> to vector<1x8x256xi32>
    %47 = arith.sitofp %46 : vector<1x8x256xi32> to vector<1x8x256xf32>
    %48 = arith.addf %43, %47 : vector<1x8x256xf32>
    %c0_28 = arith.constant 0 : index
    %c0_29 = arith.constant 0 : index
    %c0_30 = arith.constant 0 : index
    %49 = vector.load %arg4[%c0_28, %c0_29, %c0_30] : memref<1x8x256xf32, #tpu.memory_space<vmem>>, vector<1x8x256xf32>
    tpu.vector_store %arg4[%c0_28, %c0_29, %c0_30], %48 {strides = array<i32>} : memref<1x8x256xf32, #tpu.memory_space<vmem>>, vector<1x8x256xf32>,
    %c2001_i32 = arith.constant 2001 : i32
    %50 = vector.broadcast %c2001_i32 : i32 to vector<1x1x1xi32>
    %51 = arith.addi %40, %50 : vector<1x1x1xi32>
    %52 = vector.broadcast %51 : vector<1x1x1xi32> to vector<1x8x256xi32>
    %53 = arith.cmpi eq, %11, %52 : vector<1x8x256xi32>
    %cst_31 = arith.constant 0.000000e+00 : f32
    %54 = vector.broadcast %cst_31 : f32 to vector<1x8x256xf32>
    %55 = arith.select %53, %6, %54 : vector<1x8x256xi1>, vector<1x8x256xf32>
    %cst_32 = arith.constant dense<0.000000e+00> : vector<1x8xf32>
    %56 = vector.multi_reduction <add>, %55, %cst_32 [2] : vector<1x8x256xf32> to vector<1x8xf32>
    %57 = vector.shape_cast %56 : vector<1x8xf32> to vector<1x8x1xf32>
    %cst_33 = arith.constant dense<0.000000e+00> : vector<1x1xf32>
    %58 = vector.multi_reduction <add>, %57, %cst_33 [1] : vector<1x8x1xf32> to vector<1x1xf32>
    %59 = vector.shape_cast %58 : vector<1x1xf32> to vector<1x1x1xf32>
    %c2048_i32_34 = arith.constant 2048 : i32
    %60 = vector.broadcast %c2048_i32_34 : i32 to vector<1x1x1xi32>
    %61 = arith.select %29, %60, %12 : vector<1x1x1xi1>, vector<1x1x1xi32>
    %62 = arith.select %42, %51, %61 : vector<1x1x1xi1>, vector<1x1x1xi32>
    %63 = arith.select %42, %59, %26 : vector<1x1x1xi1>, vector<1x1x1xf32>
    %c2_i32 = arith.constant 2 : i32
    %64 = vector.broadcast %c2_i32 : i32 to vector<1x1x1xi32>
    %65 = arith.select %29, %64, %27 : vector<1x1x1xi1>, vector<1x1x1xi32>
    %c1_i32 = arith.constant 1 : i32
    %66 = vector.broadcast %c1_i32 : i32 to vector<1x1x1xi32>
    %67 = arith.select %42, %66, %65 : vector<1x1x1xi1>, vector<1x1x1xi32>
    %c2048_i32_35 = arith.constant 2048 : i32
    %68 = vector.broadcast %c2048_i32_35 : i32 to vector<1x1x1xi32>
    %69 = arith.cmpi slt, %62, %68 : vector<1x1x1xi32>
    %70 = vector.broadcast %63 : vector<1x1x1xf32> to vector<1x8x256xf32>
    %71 = arith.cmpf ogt, %5, %70 : vector<1x8x256xf32>
    %72 = vector.broadcast %62 : vector<1x1x1xi32> to vector<1x8x256xi32>
    %73 = arith.cmpi sge, %11, %72 : vector<1x8x256xi32>
    %74 = arith.andi %71, %73 : vector<1x8x256xi1>
    %c2048_i32_36 = arith.constant 2048 : i32
    %75 = vector.broadcast %c2048_i32_36 : i32 to vector<1x8x256xi32>
    %76 = arith.select %74, %11, %75 : vector<1x8x256xi1>, vector<1x8x256xi32>
    %cst_37 = arith.constant dense<2147483647> : vector<1x8xi32>
    %77 = vector.multi_reduction <minsi>, %76, %cst_37 [2] : vector<1x8x256xi32> to vector<1x8xi32>
    %78 = vector.shape_cast %77 : vector<1x8xi32> to vector<1x8x1xi32>
    %cst_38 = arith.constant dense<2147483647> : vector<1x1xi32>
    %79 = vector.multi_reduction <minsi>, %78, %cst_38 [1] : vector<1x8x1xi32> to vector<1x1xi32>
    %80 = vector.shape_cast %79 : vector<1x1xi32> to vector<1x1x1xi32>
    %c2048_i32_39 = arith.constant 2048 : i32
    %81 = vector.broadcast %c2048_i32_39 : i32 to vector<1x1x1xi32>
    %82 = arith.cmpi slt, %80, %81 : vector<1x1x1xi32>
    %c0_40 = arith.constant 0 : index
    %c0_41 = arith.constant 0 : index
    %c0_42 = arith.constant 0 : index
    %83 = vector.load %arg4[%c0_40, %c0_41, %c0_42] : memref<1x8x256xf32, #tpu.memory_space<vmem>>, vector<1x8x256xf32>
    %84 = vector.broadcast %80 : vector<1x1x1xi32> to vector<1x8x256xi32>
    %85 = arith.cmpi eq, %11, %84 : vector<1x8x256xi32>
    %86 = arith.extui %85 : vector<1x8x256xi1> to vector<1x8x256xi32>
    %87 = arith.sitofp %86 : vector<1x8x256xi32> to vector<1x8x256xf32>
    %88 = arith.addf %83, %87 : vector<1x8x256xf32>
    %c0_43 = arith.constant 0 : index
    %c0_44 = arith.constant 0 : index
    %c0_45 = arith.constant 0 : index
    %89 = vector.load %arg4[%c0_43, %c0_44, %c0_45] : memref<1x8x256xf32, #tpu.memory_space<vmem>>, vector<1x8x256xf32>
    tpu.vector_store %arg4[%c0_43, %c0_44, %c0_45], %88 {strides = array<i32>} : memref<1x8x256xf32, #tpu.memory_space<vmem>>, vector<1x8x256xf32>,
    %c2001_i32_46 = arith.constant 2001 : i32
    %90 = vector.broadcast %c2001_i32_46 : i32 to vector<1x1x1xi32>
    %91 = arith.addi %80, %90 : vector<1x1x1xi32>
    %92 = vector.broadcast %91 : vector<1x1x1xi32> to vector<1x8x256xi32>
    %93 = arith.cmpi eq, %11, %92 : vector<1x8x256xi32>
    %cst_47 = arith.constant 0.000000e+00 : f32
    %94 = vector.broadcast %cst_47 : f32 to vector<1x8x256xf32>
    %95 = arith.select %93, %6, %94 : vector<1x8x256xi1>, vector<1x8x256xf32>
    %cst_48 = arith.constant dense<0.000000e+00> : vector<1x8xf32>
    %96 = vector.multi_reduction <add>, %95, %cst_48 [2] : vector<1x8x256xf32> to vector<1x8xf32>
    %97 = vector.shape_cast %96 : vector<1x8xf32> to vector<1x8x1xf32>
    %cst_49 = arith.constant dense<0.000000e+00> : vector<1x1xf32>
    %98 = vector.multi_reduction <add>, %97, %cst_49 [1] : vector<1x8x1xf32> to vector<1x1xf32>
    %99 = vector.shape_cast %98 : vector<1x1xf32> to vector<1x1x1xf32>
    %c2048_i32_50 = arith.constant 2048 : i32
    %100 = vector.broadcast %c2048_i32_50 : i32 to vector<1x1x1xi32>
    %101 = arith.select %69, %100, %62 : vector<1x1x1xi1>, vector<1x1x1xi32>
    %102 = arith.select %82, %91, %101 : vector<1x1x1xi1>, vector<1x1x1xi32>
    %103 = arith.select %82, %99, %63 : vector<1x1x1xi1>, vector<1x1x1xf32>
    %c2_i32_51 = arith.constant 2 : i32
    %104 = vector.broadcast %c2_i32_51 : i32 to vector<1x1x1xi32>
    %105 = arith.select %69, %104, %67 : vector<1x1x1xi1>, vector<1x1x1xi32>
    %c1_i32_52 = arith.constant 1 : i32
    %106 = vector.broadcast %c1_i32_52 : i32 to vector<1x1x1xi32>
    %107 = arith.select %82, %106, %105 : vector<1x1x1xi1>, vector<1x1x1xi32>
    %c2048_i32_53 = arith.constant 2048 : i32
    %108 = vector.broadcast %c2048_i32_53 : i32 to vector<1x1x1xi32>
    %109 = arith.cmpi slt, %102, %108 : vector<1x1x1xi32>
    %110 = vector.broadcast %103 : vector<1x1x1xf32> to vector<1x8x256xf32>
    %111 = arith.cmpf ogt, %5, %110 : vector<1x8x256xf32>
    %112 = vector.broadcast %102 : vector<1x1x1xi32> to vector<1x8x256xi32>
    %113 = arith.cmpi sge, %11, %112 : vector<1x8x256xi32>
    %114 = arith.andi %111, %113 : vector<1x8x256xi1>
    %c2048_i32_54 = arith.constant 2048 : i32
    %115 = vector.broadcast %c2048_i32_54 : i32 to vector<1x8x256xi32>
    %116 = arith.select %114, %11, %115 : vector<1x8x256xi1>, vector<1x8x256xi32>
    %cst_55 = arith.constant dense<2147483647> : vector<1x8xi32>
    %117 = vector.multi_reduction <minsi>, %116, %cst_55 [2] : vector<1x8x256xi32> to vector<1x8xi32>
    %118 = vector.shape_cast %117 : vector<1x8xi32> to vector<1x8x1xi32>
    %cst_56 = arith.constant dense<2147483647> : vector<1x1xi32>
    %119 = vector.multi_reduction <minsi>, %118, %cst_56 [1] : vector<1x8x1xi32> to vector<1x1xi32>
    %120 = vector.shape_cast %119 : vector<1x1xi32> to vector<1x1x1xi32>
    %c2048_i32_57 = arith.constant 2048 : i32
    %121 = vector.broadcast %c2048_i32_57 : i32 to vector<1x1x1xi32>
    %122 = arith.cmpi slt, %120, %121 : vector<1x1x1xi32>
    %c0_58 = arith.constant 0 : index
    %c0_59 = arith.constant 0 : index
    %c0_60 = arith.constant 0 : index
    %123 = vector.load %arg4[%c0_58, %c0_59, %c0_60] : memref<1x8x256xf32, #tpu.memory_space<vmem>>, vector<1x8x256xf32>
    %124 = vector.broadcast %120 : vector<1x1x1xi32> to vector<1x8x256xi32>
    %125 = arith.cmpi eq, %11, %124 : vector<1x8x256xi32>
    %126 = arith.extui %125 : vector<1x8x256xi1> to vector<1x8x256xi32>
    %127 = arith.sitofp %126 : vector<1x8x256xi32> to vector<1x8x256xf32>
    %128 = arith.addf %123, %127 : vector<1x8x256xf32>
    %c0_61 = arith.constant 0 : index
    %c0_62 = arith.constant 0 : index
    %c0_63 = arith.constant 0 : index
    %129 = vector.load %arg4[%c0_61, %c0_62, %c0_63] : memref<1x8x256xf32, #tpu.memory_space<vmem>>, vector<1x8x256xf32>
    tpu.vector_store %arg4[%c0_61, %c0_62, %c0_63], %128 {strides = array<i32>} : memref<1x8x256xf32, #tpu.memory_space<vmem>>, vector<1x8x256xf32>,
    %c2001_i32_64 = arith.constant 2001 : i32
    %130 = vector.broadcast %c2001_i32_64 : i32 to vector<1x1x1xi32>
    %131 = arith.addi %120, %130 : vector<1x1x1xi32>
    %132 = vector.broadcast %131 : vector<1x1x1xi32> to vector<1x8x256xi32>
    %133 = arith.cmpi eq, %11, %132 : vector<1x8x256xi32>
    %cst_65 = arith.constant 0.000000e+00 : f32
    %134 = vector.broadcast %cst_65 : f32 to vector<1x8x256xf32>
    %135 = arith.select %133, %6, %134 : vector<1x8x256xi1>, vector<1x8x256xf32>
    %cst_66 = arith.constant dense<0.000000e+00> : vector<1x8xf32>
    %136 = vector.multi_reduction <add>, %135, %cst_66 [2] : vector<1x8x256xf32> to vector<1x8xf32>
    %137 = vector.shape_cast %136 : vector<1x8xf32> to vector<1x8x1xf32>
    %cst_67 = arith.constant dense<0.000000e+00> : vector<1x1xf32>
    %138 = vector.multi_reduction <add>, %137, %cst_67 [1] : vector<1x8x1xf32> to vector<1x1xf32>
    %139 = vector.shape_cast %138 : vector<1x1xf32> to vector<1x1x1xf32>
    %c2048_i32_68 = arith.constant 2048 : i32
    %140 = vector.broadcast %c2048_i32_68 : i32 to vector<1x1x1xi32>
    %141 = arith.select %109, %140, %102 : vector<1x1x1xi1>, vector<1x1x1xi32>
    %142 = arith.select %122, %131, %141 : vector<1x1x1xi1>, vector<1x1x1xi32>
    %143 = arith.select %122, %139, %103 : vector<1x1x1xi1>, vector<1x1x1xf32>
    %c2_i32_69 = arith.constant 2 : i32
    %144 = vector.broadcast %c2_i32_69 : i32 to vector<1x1x1xi32>
    %145 = arith.select %109, %144, %107 : vector<1x1x1xi1>, vector<1x1x1xi32>
    %c1_i32_70 = arith.constant 1 : i32
    %146 = vector.broadcast %c1_i32_70 : i32 to vector<1x1x1xi32>
    %147 = arith.select %122, %146, %145 : vector<1x1x1xi1>, vector<1x1x1xi32>
    %c0_71 = arith.constant 0 : index
    %c0_72 = arith.constant 0 : index
    %c0_73 = arith.constant 0 : index
    %148 = vector.load %arg3[%c0_71, %c0_72, %c0_73] : memref<1x1x1xf32, #tpu.memory_space<vmem>>, vector<1x1x1xf32>
    %149 = arith.subf %148, %143 : vector<1x1x1xf32>
    %cst_74 = arith.constant 0.814801931 : f32
    %150 = vector.broadcast %cst_74 : f32 to vector<1x1x1xf32>
    %151 = arith.mulf %150, %149 : vector<1x1x1xf32>
    %c2_i32_75 = arith.constant 2 : i32
    %152 = vector.broadcast %c2_i32_75 : i32 to vector<1x1x1xi32>
    %153 = arith.cmpi eq, %147, %152 : vector<1x1x1xi32>
    %c1_i32_76 = arith.constant 1 : i32
    %154 = vector.broadcast %c1_i32_76 : i32 to vector<1x1x1xi32>
    %155 = arith.cmpi eq, %147, %154 : vector<1x1x1xi32>
    %cst_77 = arith.constant -8.000000e+01 : f32
    %156 = vector.broadcast %cst_77 : f32 to vector<1x1x1xf32>
    %157 = arith.select %155, %156, %13 : vector<1x1x1xi1>, vector<1x1x1xf32>
    %158 = arith.select %153, %151, %157 : vector<1x1x1xi1>, vector<1x1x1xf32>
    %c0_78 = arith.constant 0 : index
    %c0_79 = arith.constant 0 : index
    %c0_80 = arith.constant 0 : index
    %159 = vector.load %arg5[%c0_78, %c0_79, %c0_80] : memref<1x1x1xf32, #tpu.memory_space<vmem>>, vector<1x1x1xf32>
    tpu.vector_store %arg5[%c0_78, %c0_79, %c0_80], %158 {strides = array<i32>} : memref<1x1x1xf32, #tpu.memory_space<vmem>>, vector<1x1x1xf32>,
    %c2048_i32_81 = arith.constant 2048 : i32
    %160 = vector.broadcast %c2048_i32_81 : i32 to vector<1x1x1xi32>
    %161 = arith.subi %142, %160 : vector<1x1x1xi32>
    %c0_i32_82 = arith.constant 0 : i32
    %162 = vector.broadcast %c0_i32_82 : i32 to vector<1x1x1xi32>
    %163 = arith.maxsi %161, %162 : vector<1x1x1xi32>
    %c0_83 = arith.constant 0 : index
    %c0_84 = arith.constant 0 : index
    %c0_85 = arith.constant 0 : index
    %164 = vector.load %arg6[%c0_83, %c0_84, %c0_85] : memref<1x1x1xi32, #tpu.memory_space<vmem>>, vector<1x1x1xi32>
    tpu.vector_store %arg6[%c0_83, %c0_84, %c0_85], %163 {strides = array<i32>} : memref<1x1x1xi32, #tpu.memory_space<vmem>>, vector<1x1x1xi32>,
    return
  }
  func.func @transform_0(%arg0: i32) -> (i32, i32, i32) {
    %c0_i32 = arith.constant 0 : i32
    %c0_i32_0 = arith.constant 0 : i32
    %c0_i32_1 = arith.constant 0 : i32
    return %arg0, %c0_i32, %c0_i32_0 : i32, i32, i32
  }
  func.func @transform_1(%arg0: i32) -> (i32, i32, i32) {
    %c0_i32 = arith.constant 0 : i32
    %c0_i32_0 = arith.constant 0 : i32
    %c0_i32_1 = arith.constant 0 : i32
    return %arg0, %c0_i32, %c0_i32_0 : i32, i32, i32
  }
  func.func @transform_2(%arg0: i32) -> (i32, i32, i32) {
    %c0_i32 = arith.constant 0 : i32
    %c0_i32_0 = arith.constant 0 : i32
    %c0_i32_1 = arith.constant 0 : i32
    return %arg0, %c0_i32, %c0_i32_0 : i32, i32, i32
  }
  func.func @transform_3(%arg0: i32) -> (i32, i32, i32) {
    %c0_i32 = arith.constant 0 : i32
    %c0_i32_0 = arith.constant 0 : i32
    %c0_i32_1 = arith.constant 0 : i32
    return %arg0, %c0_i32, %c0_i32_0 : i32, i32, i32
  }
}

</mosaic_0001>

<llo_original>
// kernel: tpu_custom_call.1
$region0: #{tpu_custom_call.1}
  #allocation0 [shape = 'u32[]', space=smem, size = 0x4, offset = 0x4, fixed_abs, tag = 'smem constant byte address 0x4 - core index']
  #allocation1 [shape = 'u32[144,128]{1,0:T(1,128)}', space=vmem, size = 0x12000, scoped, tag = 'internal scratch']
  #allocation2 [shape = 'f32[1,1,1]{2,1,0:T(1,128)}', space=vmem, size = 0x200, scoped, tag = 'scratch operand']
  #allocation3 [shape = 's32[1,1,1]{2,1,0:T(1,128)}', space=vmem, size = 0x200, scoped, tag = 'scratch operand']
  #allocation4 [shape = 'f32[1,1,1]{2,1,0:T(1,128)S(1)}', space=vmem, size = 0x200, scoped, tag = 'scoped memory for tpu_custom_call.1']
  %s0 = inlined_call_operand.hbm [shape: f32[1,8,256], index: 0, kind: input, shape index: {}]
  %s1 = inlined_call_operand.hbm [shape: f32[1,8,256], index: 1, kind: input, shape index: {}]
  %s2 = inlined_call_operand.<no memory space> [shape: f32[1,1,1], index: 2, kind: input, shape index: {}]
  %s3 = inlined_call_operand.hbm [shape: f32[1,8,256], index: 3, kind: output, shape index: {}]
  %s4 = sld [smem:[#allocation0]]
  $region34: #{tpu_custom_call.1} parent=0
    _
  %s6 = ssub.s32 1, %s4
  %s7 = scalar_select 0, %s6, %s4
  %v8 = vstv %s2
  %9 = vst [vmem:[#allocation4] sm:$0x1] %v8
  $region1: #{tpu_custom_call.1} parent=0
    #allocation5 [shape = 'u8[8192]{0}', space=vmem, size = 0x2000, scoped, tag = 'input window, operand 0, single buffered']
    #allocation6 [shape = 's32[1]{0}', space=sflag, size = 0x4, scoped, tag = 'scoped memory for tpu_custom_call.1']
    #allocation7 [shape = 's32[1]{0}', space=sflag, size = 0x4, scoped, tag = 'scoped memory for tpu_custom_call.1']
    #allocation8 [shape = 'u8[8192]{0}', space=vmem, size = 0x2000, scoped, tag = 'input window, operand 1, single buffered']
    #allocation9 [shape = 's32[1]{0}', space=sflag, size = 0x4, scoped, tag = 'scoped memory for tpu_custom_call.1']
    #allocation10 [shape = 'u8[8192]{0}', space=vmem, size = 0x2000, scoped, tag = 'output window, operand 0, single buffered']
    %10 = vsyncpa [#allocation6], 0
    %11 = vsyncpa [#allocation9], 0
    %12 = vsyncpa [#allocation7], 0
    // Predicated region
    $region2: #{tpu_custom_call.1} parent=1 // pred_check
      _
    $region3: #{tpu_custom_call.1} parent=1 // pred_check_branch
      %14 = sbr.rel (0) target = $region5
    $region4: #{tpu_custom_call.1} parent=1 // pred_region
      %s16 = ssub.s32 256, 256
      %17 = vsyncadd [#allocation6], %s16
      %s19 = sshll.u32 [#allocation5], 4
      %s20 = int_to_ptr.vmem [resolvable:$true] %s19
      %22 = dma.hbm_to_vmem [thread:$0]  %s0, 256, %s20, [#allocation6]
    $region5: #{tpu_custom_call.1} parent=1 // pred_fallthru
      _
    // Predicated region
    $region6: #{tpu_custom_call.1} parent=1 // pred_check
      _
    $region7: #{tpu_custom_call.1} parent=1 // pred_check_branch
      %24 = sbr.rel (0) target = $region9
    $region8: #{tpu_custom_call.1} parent=1 // pred_region
      %s26 = ssub.s32 256, 256
      %27 = vsyncadd [#allocation9], %s26
      %s29 = sshll.u32 [#allocation8], 4
      %s30 = int_to_ptr.vmem [resolvable:$true] %s29
      %32 = dma.hbm_to_vmem [thread:$0]  %s1, 256, %s30, [#allocation9]
    $region9: #{tpu_custom_call.1} parent=1 // pred_fallthru
      _
    // Predicated region
    $region10: #{tpu_custom_call.1} parent=1 // pred_check
      _
    $region11: #{tpu_custom_call.1} parent=1 // pred_check_branch
      %34 = sbr.rel (0) target = $region13
    $region12: #{tpu_custom_call.1} parent=1 // pred_region
      _
    $region13: #{tpu_custom_call.1} parent=1 // pred_fallthru
      _
    // Predicated region
    $region14: #{tpu_custom_call.1} parent=1 // pred_check
      _
    $region15: #{tpu_custom_call.1} parent=1 // pred_check_branch
      %36 = sbr.rel (0) target = $region17
    $region16: #{tpu_custom_call.1} parent=1 // pred_region
      %37 = dma.done [#allocation6], 256
    $region17: #{tpu_custom_call.1} parent=1 // pred_fallthru
      _
    // Predicated region
    $region18: #{tpu_custom_call.1} parent=1 // pred_check
      _
    $region19: #{tpu_custom_call.1} parent=1 // pred_check_branch
      %39 = sbr.rel (0) target = $region21
    $region20: #{tpu_custom_call.1} parent=1 // pred_region
      %40 = dma.done [#allocation9], 256
    $region21: #{tpu_custom_call.1} parent=1 // pred_fallthru
      _
    %p41 = scmp.eq.s32.totalorder 0, 0
    // Predicated region
    $region22: #{tpu_custom_call.1} parent=1 // pred_check
      %p42 = pneg %p41
    $region23: #{tpu_custom_call.1} parent=1 // pred_check_branch
      %44 = sbr.rel (%p42) target = $region25
    $region24: #{tpu_custom_call.1} parent=1 // pred_region
      %vm45 = vcmask 0
      %46 = vst.msk [vmem:[#allocation2] sm:$0x1] %vm45, -70.0
      %47 = vst.msk [vmem:[#allocation3] sm:$0x1] %vm45, 0
    $region25: #{tpu_custom_call.1} parent=1 // pred_fallthru
      _
    %48 = vst [vmem:[#allocation10] sm:$0xff] 0.0
    %49 = vst [vmem:[#allocation10 + $0x8] sm:$0xff] 0.0
    %v50 = vld [vmem:[#allocation5] sm:$0xff]
    %v51 = vld [vmem:[#allocation5 + $0x8] sm:$0xff]
    %v52 = vld [vmem:[#allocation8] sm:$0xff]
    %v53 = vld [vmem:[#allocation8 + $0x8] sm:$0xff]
    %v54 = vlaneseq
    %v55 = vshrl.u32 %v54, 7
    %v56 = vlaneseq
    %v57 = vand.u32 %v56, 127
    %v58 = vadd.s32 %v57, 128
    %v59 = vmul.u32 %v55, 256
    %v60 = vadd.s32 %v59, %v57
    %v61 = vadd.s32 %v59, %v58
    %v62 = vld [vmem:[#allocation3] sm:$0x1]
    %v63 = vld [vmem:[#allocation2] sm:$0x1]
    %vm64 = vcmp.eq.s32.totalorder %v62, 0
    %v65 = vsub.f32 0.0, %v63
    %v66 = vlaneseq
    %v67 = vshrl.u32 %v66, 7
    %v68 = vsub.s32 0, %v67
    %v69 = vrot.slane %v62, %v68
    %70 = vset.pattern.permute.xlu0 0
    %71 = vperm.xlu0 %70, %v69
    %v72 = vpop.permute.xlu0 %71
    %vm73 = vcmp.eq.s32.totalorder %v60, %v72
    %vm74 = vcmp.eq.s32.totalorder %v61, %v72
    %v75 = vsel %vm73, %v52, 0.0
    %v76 = vsel %vm74, %v53, 0.0
    %v77 = vadd.f32 %v75, %v76
    %78 = vadd.xlane.f32.xlu0 %v77
    %v79 = vpop.xlane.xlu0 %78
    %v80 = vrot.slane %v79, 4
    %v81 = vadd.f32 %v79, %v80
    %v82 = vrot.slane %v81, 2
    %v83 = vadd.f32 %v81, %v82
    %v84 = vrot.slane %v83, 1
    %v85 = vadd.f32 %v83, %v84
    %v86 = vsel %vm64, %v65, %v85
    %vm87 = vcmp.lt.s32.totalorder %v62, 2048
    %v89 = vlaneseq
    %v90 = vshrl.u32 %v89, 7
    %v91 = vsub.s32 0, %v90
    %v92 = vrot.slane %v86, %v91
    %93 = vset.pattern.permute.xlu0 0
    %94 = vperm.xlu0 %93, %v92
    %v95 = vpop.permute.xlu0 %94
    %vm97 = vcmp.gt.f32.partialorder %v50, %v95
    %vm98 = vcmp.gt.f32.partialorder %v51, %v95
    %vm99 = vcmp.ge.s32.totalorder %v60, %v72
    %vm100 = vcmp.ge.s32.totalorder %v61, %v72
    %vm101 = vmand %vm97, %vm99
    %vm102 = vmand %vm98, %vm100
    %v103 = vsel %vm101, %v60, 2048
    %v104 = vsel %vm102, %v61, 2048
    %vm105 = vcmp.lt.s32.totalorder %v103, %v104
    %v106 = vsel %vm105, %v103, %v104
    %v107 = vand.u32 %v106, 65535
    %v108 = vshra.s32 %v106, 16
    %v109 = vcvt.s32.f32 %v107
    %v110 = vcvt.s32.f32 %v108
    %111 = vmin.xlane.f32.xlu0 %v110
    %v112 = vpop.xlane.xlu0 %111
    %vm113 = vcmp.eq.f32.partialorder %v110, %v112
    %v114 = vsel %vm113, %v109, inf
    %115 = vmin.xlane.f32.xlu0 %v114
    %v116 = vpop.xlane.xlu0 %115
    %v117 = vcvt.f32.s32 %v116
    %v118 = vcvt.f32.s32 %v112
    %v119 = vshll.u32 %v118, 16
    %v120 = vadd.s32 %v119, %v117
    %v121 = vrot.slane %v120, 4
    %vm122 = vcmp.lt.s32.totalorder %v120, %v121
    %v123 = vsel %vm122, %v120, %v121
    %v124 = vrot.slane %v123, 2
    %vm125 = vcmp.lt.s32.totalorder %v123, %v124
    %v126 = vsel %vm125, %v123, %v124
    %v127 = vrot.slane %v126, 1
    %vm128 = vcmp.lt.s32.totalorder %v126, %v127
    %v129 = vsel %vm128, %v126, %v127
    %vm130 = vcmp.lt.s32.totalorder %v129, 2048
    %v131 = vld [vmem:[#allocation10] sm:$0xff]
    %v132 = vld [vmem:[#allocation10 + $0x8] sm:$0xff]
    %vm133 = vcmp.eq.s32.totalorder %v60, %v129
    %vm134 = vcmp.eq.s32.totalorder %v61, %v129
    %v135 = vsel %vm133, 1, 0
    %v136 = vsel %vm134, 1, 0
    %v137 = vcvt.s32.f32 %v135
    %v138 = vcvt.s32.f32 %v136
    %v139 = vadd.f32 %v131, %v137
    %v140 = vadd.f32 %v132, %v138
    %141 = vst [vmem:[#allocation10] sm:$0xff] %v139
    %142 = vst [vmem:[#allocation10 + $0x8] sm:$0xff] %v140
    %v143 = vadd.s32 %v129, 2001
    %vm144 = vcmp.eq.s32.totalorder %v60, %v143
    %vm145 = vcmp.eq.s32.totalorder %v61, %v143
    %v146 = vsel %vm144, %v52, 0.0
    %v147 = vsel %vm145, %v53, 0.0
    %v148 = vadd.f32 %v146, %v147
    %149 = vadd.xlane.f32.xlu0 %v148
    %v150 = vpop.xlane.xlu0 %149
    %v151 = vrot.slane %v150, 4
    %v152 = vadd.f32 %v150, %v151
    %v153 = vrot.slane %v152, 2
    %v154 = vadd.f32 %v152, %v153
    %v155 = vrot.slane %v154, 1
    %v156 = vadd.f32 %v154, %v155
    %v157 = vsel %vm87, 2048, %v62
    %v158 = vsel %vm130, %v143, %v157
    %v159 = vsel %vm130, %v156, %v86
    %v160 = vsel %vm87, 2, 0
    %v161 = vsel %vm130, 1, %v160
    %vm162 = vcmp.lt.s32.totalorder %v158, 2048
    %v164 = vlaneseq
    %v165 = vshrl.u32 %v164, 7
    %v166 = vsub.s32 0, %v165
    %v167 = vrot.slane %v159, %v166
    %168 = vset.pattern.permute.xlu0 0
    %169 = vperm.xlu0 %168, %v167
    %v170 = vpop.permute.xlu0 %169
    %vm172 = vcmp.gt.f32.partialorder %v50, %v170
    %vm173 = vcmp.gt.f32.partialorder %v51, %v170
    %v174 = vlaneseq
    %v175 = vshrl.u32 %v174, 7
    %v176 = vsub.s32 0, %v175
    %v177 = vrot.slane %v158, %v176
    %178 = vset.pattern.permute.xlu0 0
    %179 = vperm.xlu0 %178, %v177
    %v180 = vpop.permute.xlu0 %179
    %vm181 = vcmp.ge.s32.totalorder %v60, %v180
    %vm182 = vcmp.ge.s32.totalorder %v61, %v180
    %vm183 = vmand %vm172, %vm181
    %vm184 = vmand %vm173, %vm182
    %v185 = vsel %vm183, %v60, 2048
    %v186 = vsel %vm184, %v61, 2048
    %vm187 = vcmp.lt.s32.totalorder %v185, %v186
    %v188 = vsel %vm187, %v185, %v186
    %v189 = vand.u32 %v188, 65535
    %v190 = vshra.s32 %v188, 16
    %v191 = vcvt.s32.f32 %v189
    %v192 = vcvt.s32.f32 %v190
    %193 = vmin.xlane.f32.xlu0 %v192
    %v194 = vpop.xlane.xlu0 %193
    %vm195 = vcmp.eq.f32.partialorder %v192, %v194
    %v196 = vsel %vm195, %v191, inf
    %197 = vmin.xlane.f32.xlu0 %v196
    %v198 = vpop.xlane.xlu0 %197
    %v199 = vcvt.f32.s32 %v198
    %v200 = vcvt.f32.s32 %v194
    %v201 = vshll.u32 %v200, 16
    %v202 = vadd.s32 %v201, %v199
    %v203 = vrot.slane %v202, 4
    %vm204 = vcmp.lt.s32.totalorder %v202, %v203
    %v205 = vsel %vm204, %v202, %v203
    %v206 = vrot.slane %v205, 2
    %vm207 = vcmp.lt.s32.totalorder %v205, %v206
    %v208 = vsel %vm207, %v205, %v206
    %v209 = vrot.slane %v208, 1
    %vm210 = vcmp.lt.s32.totalorder %v208, %v209
    %v211 = vsel %vm210, %v208, %v209
    %vm212 = vcmp.lt.s32.totalorder %v211, 2048
    %v213 = vld [vmem:[#allocation10] sm:$0xff]
    %v214 = vld [vmem:[#allocation10 + $0x8] sm:$0xff]
    %vm215 = vcmp.eq.s32.totalorder %v60, %v211
    %vm216 = vcmp.eq.s32.totalorder %v61, %v211
    %v217 = vsel %vm215, 1, 0
    %v218 = vsel %vm216, 1, 0
    %v219 = vcvt.s32.f32 %v217
    %v220 = vcvt.s32.f32 %v218
    %v221 = vadd.f32 %v213, %v219
    %v222 = vadd.f32 %v214, %v220
    %223 = vst [vmem:[#allocation10] sm:$0xff] %v221
    %224 = vst [vmem:[#allocation10 + $0x8] sm:$0xff] %v222
    %v225 = vadd.s32 %v211, 2001
    %vm226 = vcmp.eq.s32.totalorder %v60, %v225
    %vm227 = vcmp.eq.s32.totalorder %v61, %v225
    %v228 = vsel %vm226, %v52, 0.0
    %v229 = vsel %vm227, %v53, 0.0
    %v230 = vadd.f32 %v228, %v229
    %231 = vadd.xlane.f32.xlu0 %v230
    %v232 = vpop.xlane.xlu0 %231
    %v233 = vrot.slane %v232, 4
    %v234 = vadd.f32 %v232, %v233
    %v235 = vrot.slane %v234, 2
    %v236 = vadd.f32 %v234, %v235
    %v237 = vrot.slane %v236, 1
    %v238 = vadd.f32 %v236, %v237
    %v239 = vsel %vm162, 2048, %v158
    %v240 = vsel %vm212, %v225, %v239
    %v241 = vsel %vm212, %v238, %v159
    %v242 = vsel %vm162, 2, %v161
    %v243 = vsel %vm212, 1, %v242
    %vm244 = vcmp.lt.s32.totalorder %v240, 2048
    %v246 = vlaneseq
    %v247 = vshrl.u32 %v246, 7
    %v248 = vsub.s32 0, %v247
    %v249 = vrot.slane %v241, %v248
    %250 = vset.pattern.permute.xlu0 0
    %251 = vperm.xlu0 %250, %v249
    %v252 = vpop.permute.xlu0 %251
    %vm254 = vcmp.gt.f32.partialorder %v50, %v252
    %vm255 = vcmp.gt.f32.partialorder %v51, %v252
    %v256 = vlaneseq
    %v257 = vshrl.u32 %v256, 7
    %v258 = vsub.s32 0, %v257
    %v259 = vrot.slane %v240, %v258
    %260 = vset.pattern.permute.xlu0 0
    %261 = vperm.xlu0 %260, %v259
    %v262 = vpop.permute.xlu0 %261
    %vm263 = vcmp.ge.s32.totalorder %v60, %v262
    %vm264 = vcmp.ge.s32.totalorder %v61, %v262
    %vm265 = vmand %vm254, %vm263
    %vm266 = vmand %vm255, %vm264
    %v267 = vsel %vm265, %v60, 2048
    %v268 = vsel %vm266, %v61, 2048
    %vm269 = vcmp.lt.s32.totalorder %v267, %v268
    %v270 = vsel %vm269, %v267, %v268
    %v271 = vand.u32 %v270, 65535
    %v272 = vshra.s32 %v270, 16
    %v273 = vcvt.s32.f32 %v271
    %v274 = vcvt.s32.f32 %v272
    %275 = vmin.xlane.f32.xlu0 %v274
    %v276 = vpop.xlane.xlu0 %275
    %vm277 = vcmp.eq.f32.partialorder %v274, %v276
    %v278 = vsel %vm277, %v273, inf
    %279 = vmin.xlane.f32.xlu0 %v278
    %v280 = vpop.xlane.xlu0 %279
    %v281 = vcvt.f32.s32 %v280
    %v282 = vcvt.f32.s32 %v276
    %v283 = vshll.u32 %v282, 16
    %v284 = vadd.s32 %v283, %v281
    %v285 = vrot.slane %v284, 4
    %vm286 = vcmp.lt.s32.totalorder %v284, %v285
    %v287 = vsel %vm286, %v284, %v285
    %v288 = vrot.slane %v287, 2
    %vm289 = vcmp.lt.s32.totalorder %v287, %v288
    %v290 = vsel %vm289, %v287, %v288
    %v291 = vrot.slane %v290, 1
    %vm292 = vcmp.lt.s32.totalorder %v290, %v291
    %v293 = vsel %vm292, %v290, %v291
    %vm294 = vcmp.lt.s32.totalorder %v293, 2048
    %v295 = vld [vmem:[#allocation10] sm:$0xff]
    %v296 = vld [vmem:[#allocation10 + $0x8] sm:$0xff]
    %vm297 = vcmp.eq.s32.totalorder %v60, %v293
    %vm298 = vcmp.eq.s32.totalorder %v61, %v293
    %v299 = vsel %vm297, 1, 0
    %v300 = vsel %vm298, 1, 0
    %v301 = vcvt.s32.f32 %v299
    %v302 = vcvt.s32.f32 %v300
    %v303 = vadd.f32 %v295, %v301
    %v304 = vadd.f32 %v296, %v302
    %305 = vst [vmem:[#allocation10] sm:$0xff] %v303
    %306 = vst [vmem:[#allocation10 + $0x8] sm:$0xff] %v304
    %v307 = vadd.s32 %v293, 2001
    %vm308 = vcmp.eq.s32.totalorder %v60, %v307
    %vm309 = vcmp.eq.s32.totalorder %v61, %v307
    %v310 = vsel %vm308, %v52, 0.0
    %v311 = vsel %vm309, %v53, 0.0
    %v312 = vadd.f32 %v310, %v311
    %313 = vadd.xlane.f32.xlu0 %v312
    %v314 = vpop.xlane.xlu0 %313
    %v315 = vrot.slane %v314, 4
    %v316 = vadd.f32 %v314, %v315
    %v317 = vrot.slane %v316, 2
    %v318 = vadd.f32 %v316, %v317
    %v319 = vrot.slane %v318, 1
    %v320 = vadd.f32 %v318, %v319
    %v321 = vsel %vm244, 2048, %v240
    %v322 = vsel %vm294, %v307, %v321
    %v323 = vsel %vm294, %v320, %v241
    %v324 = vsel %vm244, 2, %v243
    %v325 = vsel %vm294, 1, %v324
    %v326 = vld [vmem:[#allocation4] sm:$0x1]
    %v327 = vsub.f32 %v326, %v323
    %v328 = vmul.f32 %v327, 0.81480193
    %vm329 = vcmp.eq.s32.totalorder %v325, 2
    %vm330 = vcmp.eq.s32.totalorder %v325, 1
    %v331 = vsel %vm330, -80.0, %v63
    %v332 = vsel %vm329, %v328, %v331
    %vm333 = vcmask 0
    %334 = vst.msk [vmem:[#allocation2] sm:$0x1] %vm333, %v332
    %v335 = vsub.s32 %v322, 2048
    %vm336 = vcmp.gt.s32.totalorder %v335, 0
    %v337 = vsel %vm336, %v335, 0
    %338 = vst.msk [vmem:[#allocation3] sm:$0x1] %vm333, %v337
    // Predicated region
    $region26: #{tpu_custom_call.1} parent=1 // pred_check
      _
    $region27: #{tpu_custom_call.1} parent=1 // pred_check_branch
      %340 = sbr.rel (0) target = $region29
    $region28: #{tpu_custom_call.1} parent=1 // pred_region
      %s342 = ssub.s32 256, 256
      %343 = vsyncadd [#allocation7], %s342
      %s345 = sshll.u32 [#allocation10], 4
      %s346 = int_to_ptr.vmem [resolvable:$true] %s345
      %348 = dma.vmem_to_hbm [thread:$0]  %s346, 256, %s3, [#allocation7]
    $region29: #{tpu_custom_call.1} parent=1 // pred_fallthru
      _
    // Predicated region
    $region30: #{tpu_custom_call.1} parent=1 // pred_check
      _
    $region31: #{tpu_custom_call.1} parent=1 // pred_check_branch
      %350 = sbr.rel (0) target = $region33
    $region32: #{tpu_custom_call.1} parent=1 // pred_region
      %351 = dma.done [#allocation7], 256
    $region33: #{tpu_custom_call.1} parent=1 // pred_fallthru
      _
    %352 = vsyncpa [#allocation6], 1
    %353 = vsyncpa [#allocation9], 1
    %354 = vsyncpa [#allocation7], 1

</llo_original>
